<compile_context>
chip_gen: v5e
topology: v5e:2x2
jax: 0.10.0
libtpu: 0.0.40
codegen_flags: <defaults>
</compile_context>

<pallas_src>
import functools

import jax
import jax.numpy as jnp
from jax.experimental import pallas as pl
from jax.experimental.pallas import tpu as pltpu


def _round_up(x, m):
    return ((x + m - 1) // m) * m


def _vmem_capacity_bytes():
    try:
        info = pltpu.get_tpu_info()
        cap = int(getattr(info, "vmem_capacity_bytes", 0))
        if cap > 0:
            return cap
    except Exception:
        pass
    return 64 << 20  # conservative fallback (v7x per-TC size)


def _plan(N, C, S, itemsize):
    """Pick (bn, ts, s_pad, vmem_limit) from the per-generation VMEM budget."""
    s128 = _round_up(max(S, 1), 128)
    cap = _vmem_capacity_bytes()
    vmem_limit = min((cap * 3) // 4, 96 << 20)  # ~96 MiB v5e/v6e, ~48 MiB v7x
    # Per grid step: 2x native l block (double-buffered input) + ~2x f32-sized
    # elementwise temps (w*l product, e*l product).  Outputs/scratch are small.
    mult = 2.0 + 8.0 / float(itemsize)
    block_budget = max(int(vmem_limit * 0.7 / mult), 8 * 128 * itemsize)

    per_sample = C * s128 * itemsize
    if per_sample * min(N, 8) <= block_budget:
        # Full spatial extent per step; tile over batch only.
        rows = max(1, block_budget // per_sample)
        if rows >= N:
            bn = N
        else:
            bn = max(8, (rows // 8) * 8)
            if bn >= N:
                bn = N
        ts = s128
    else:
        # Per-sample slab too big for VMEM: small batch tile + spatial tiling
        # (online softmax in the kernel).
        bn = min(8, N)
        units_total = s128 // 128
        target_units = max(1, int(block_budget // (bn * C * itemsize * 128)))
        target_units = min(target_units, units_total)
        ts_units = 1
        for d in range(target_units, 0, -1):  # largest divisor of units_total
            if units_total % d == 0:
                ts_units = d
                break
        ts = ts_units * 128

    # Keep >= 2 batch blocks for larger batches so the "parallel" batch axis can
    # shard across both TensorCores on v7x (harmless on v5e/v6e).
    if N >= 16:
        cap_bn = _round_up(-(-N // 2), 8)
        if cap_bn < bn:
            bn = cap_bn
    return bn, ts, s128, vmem_limit


def _attn_kernel(l_ref, bias_ref, w_ref, c_ref, gout_ref,
                 m_sc, d_sc, acc_sc, *,
                 normalize_attn, s_valid, s_total, ts, inv_s):
    # l_ref:    (Bn, C, Ts)  native dtype
    # bias_ref: (Bn, 1)      f32   (= sum_c w[c] * g[n, c])
    # w_ref:    (C, 1)       f32
    # c_ref:    (Bn, Ts)     out (per spatial tile)
    # gout_ref: (Bn, C)      out (written on last spatial tile)
    # m_sc/d_sc/acc_sc: online-softmax scratch (f32)
    j = pl.program_id(1)
    last = pl.num_programs(1) - 1

    w = w_ref[...]                                   # (C, 1) f32
    bias = bias_ref[...]                             # (Bn, 1) f32

    # c[b, s] = sum_c w[c] * l[b, c, s] + bias[b]
    # (single-row contraction: VPU multiply + sublane reduce; MXU buys nothing.
    #  Cast at the use site so no (Bn,C,Ts) f32 temp stays live across phases.)
    c_t = jnp.sum(l_ref[...].astype(jnp.float32) * w[None, :, :], axis=1) + bias
    c_ref[...] = c_t.astype(c_ref.dtype)

    if s_total != s_valid:
        # Lane-padded spatial positions: mask to -inf for the softmax stats.
        s_idx = jax.lax.broadcasted_iota(jnp.int32, c_t.shape, 1) + j * ts
        c_m = jnp.where(s_idx < s_valid, c_t, -jnp.inf)
    else:
        c_m = c_t

    if normalize_attn:
        @pl.when(j == 0)
        def _():
            m_sc[...] = jnp.full_like(m_sc, -jnp.inf)
            d_sc[...] = jnp.zeros_like(d_sc)
            acc_sc[...] = jnp.zeros_like(acc_sc)

        m_prev = m_sc[...]
        m_new = jnp.maximum(m_prev, jnp.max(c_m, axis=-1, keepdims=True))
        alpha = jnp.exp(m_prev - m_new)                        # (Bn, 1)
        e = jnp.exp(c_m - m_new)                               # (Bn, Ts)
        d_sc[...] = alpha * d_sc[...] + jnp.sum(e, axis=-1, keepdims=True)
        acc_sc[...] = alpha * acc_sc[...] + jnp.sum(
            e[:, None, :] * l_ref[...].astype(jnp.float32), axis=-1)   # (Bn, C)
        m_sc[...] = m_new

        @pl.when(j == last)
        def _():
            # Exact divide (tiny (Bn, C) op) for f32 parity with the reference.
            gout_ref[...] = (acc_sc[...] / d_sc[...]).astype(gout_ref.dtype)
    else:
        @pl.when(j == 0)
        def _():
            acc_sc[...] = jnp.zeros_like(acc_sc)

        a = jax.nn.sigmoid(c_t)                                # (Bn, Ts)
        # Padded spatial lanes of l are zero, so their a*l contribution is zero.
        acc_sc[...] = acc_sc[...] + jnp.sum(
            a[:, None, :] * l_ref[...].astype(jnp.float32), axis=-1)

        @pl.when(j == last)
        def _():
            gout_ref[...] = (acc_sc[...] * inv_s).astype(gout_ref.dtype)


def parametrized_attention_block(l, g, conv_weight, *, normalize_attn=True):
    """l: (N, C, W, H), g: (N, C), conv_weight: (1, C, 1, 1) -> (c, g_out)."""
    N, C, W, H = l.shape
    S = W * H
    out_dtype = l.dtype
    itemsize = jnp.dtype(l.dtype).itemsize

    bn, ts, s_pad, vmem_limit = _plan(N, C, S, itemsize)

    l_r = l.reshape(N, C, S)
    if s_pad != S:
        # Lane-pad the flattened spatial axis to a multiple of 128 (keeps c
        # stores lane-dense and spatial tiles uniform); masked in-kernel.
        l_r = jnp.pad(l_r, ((0, 0), (0, 0), (0, s_pad - S)))

    w_vec = conv_weight.reshape(C).astype(jnp.float32)
    bias = (g.astype(jnp.float32) @ w_vec).reshape(N, 1)       # (N, 1) f32
    w_col = w_vec.reshape(C, 1)                                # channels on sublanes

    n_batch = -(-N // bn)
    n_spatial = s_pad // ts
    n_rows_out = n_batch * bn
    ragged = (N % bn) != 0
    clamp = max(N // bn - 1, 0)

    if ragged:
        # Last batch block re-reads a full in-bounds block (no jnp.pad copy of
        # l); its duplicate output rows are sliced off below.
        l_map = lambda i, j: (jnp.minimum(i, clamp), 0, j)
        b_map = lambda i, j: (jnp.minimum(i, clamp), 0)
    else:
        l_map = lambda i, j: (i, 0, j)
        b_map = lambda i, j: (i, 0)

    kernel = functools.partial(
        _attn_kernel,
        normalize_attn=normalize_attn,
        s_valid=S, s_total=s_pad, ts=ts, inv_s=1.0 / float(S))

    cost = pl.CostEstimate(
        flops=4 * N * C * S,
        transcendentals=N * S,
        bytes_accessed=(N * C * S * itemsize            # stream l once
                        + N * S * itemsize              # write c
                        + N * C * itemsize + N * C * 4  # write gout, read g-bias
                        ))

    c_out, gout = pl.pallas_call(
        kernel,
        out_shape=(
            jax.ShapeDtypeStruct((n_rows_out, s_pad), out_dtype),
            jax.ShapeDtypeStruct((n_rows_out, C), out_dtype),
        ),
        grid_spec=pltpu.PrefetchScalarGridSpec(
            num_scalar_prefetch=0,
            grid=(n_batch, n_spatial),
            in_specs=[
                pl.BlockSpec((bn, C, ts), l_map),
                pl.BlockSpec((bn, 1), b_map),
                pl.BlockSpec((C, 1), lambda i, j: (0, 0)),
            ],
            out_specs=(
                pl.BlockSpec((bn, ts), lambda i, j: (i, j)),
                pl.BlockSpec((bn, C), lambda i, j: (i, 0)),
            ),
            scratch_shapes=[
                pltpu.VMEM((bn, 1), jnp.float32),   # running max
                pltpu.VMEM((bn, 1), jnp.float32),   # running denom
                pltpu.VMEM((bn, C), jnp.float32),   # gout accumulator
            ],
        ),
        compiler_params=pltpu.CompilerParams(
            dimension_semantics=("parallel", "arbitrary"),
            vmem_limit_bytes=vmem_limit,
        ),
        cost_estimate=cost,
    )(l_r, bias, w_col)

    c_full = c_out[:N, :S].reshape(N, 1, W, H)
    return c_full, gout[:N]


def _reference(l, g, conv_weight, *, normalize_attn=True):
    """Plain-JAX reference mirroring the PyTorch forward."""
    N, C, W, H = l.shape
    x = l + g[:, :, None, None]
    c = jnp.einsum('nchw,c->nhw', x, conv_weight.reshape(C))[:, None]   # (N,1,W,H)
    if normalize_attn:
        a = jax.nn.softmax(c.reshape(N, 1, -1), axis=2).reshape(N, 1, W, H)
        gout = (a * l).reshape(N, C, -1).sum(axis=2)
    else:
        a = jax.nn.sigmoid(c)
        gout = (a * l).mean(axis=(2, 3))
    return c, gout


if __name__ == "__main__":
    key = jax.random.PRNGKey(0)
    k_l, k_g, k_w, k_u = jax.random.split(key, 4)

    N, C, W, H = 2, 4, 16, 16
    l = jax.random.normal(k_l, (N, C, W, H), dtype=jnp.float32)
    g = jax.random.normal(k_g, (N, C), dtype=jnp.float32)
    conv_weight = jax.random.normal(k_w, (1, C, 1, 1), dtype=jnp.float32)
    u = jax.random.normal(k_u, (), dtype=jnp.float32)  # unused in forward (as in PyTorch)

    ok = True
    for norm in (True, False):
        c_out, gout = parametrized_attention_block(l, g, conv_weight,
                                                   normalize_attn=norm)
        jax.block_until_ready((c_out, gout))
        c_ref, gout_ref = _reference(l, g, conv_weight, normalize_attn=norm)
        assert c_out.shape == (N, 1, W, H) and gout.shape == (N, C)
        ok &= bool(jnp.allclose(c_out, c_ref, atol=2e-3, rtol=2e-3))
        ok &= bool(jnp.allclose(gout, gout_ref, atol=2e-3, rtol=2e-3))

    assert ok
    print("KERNEL_OK")
</pallas_src>

<mosaic_0001>
module attributes {stable_mosaic.version = 11 : i64} {
  func.func @_attn_kernel(%arg0: i32, %arg1: i32, %arg2: memref<2x4x256xf32, #tpu.memory_space<vmem>>, %arg3: memref<2x1xf32, #tpu.memory_space<vmem>>, %arg4: memref<4x1xf32, #tpu.memory_space<vmem>>, %arg5: memref<2x256xf32, #tpu.memory_space<vmem>>, %arg6: memref<2x4xf32, #tpu.memory_space<vmem>>, %arg7: memref<2x1xf32, #tpu.memory_space<vmem>>, %arg8: memref<2x1xf32, #tpu.memory_space<vmem>>, %arg9: memref<2x4xf32, #tpu.memory_space<vmem>>) attributes {dimension_semantics = [#tpu.dimension_semantics<parallel>, #tpu.dimension_semantics<arbitrary>], iteration_bounds = array<i64: 1, 1>, scalar_prefetch = 0 : i64, scratch_operands = 3 : i64, tpu.core_type = #tpu.core_type<tc>, window_params = [{transform_indices = @transform_0, window_bounds = array<i64: 2, 4, 256>}, {transform_indices = @transform_1, window_bounds = array<i64: 2, 1>}, {pipeline_mode = #tpu.pipeline_mode<synchronous>, transform_indices = @transform_2, window_bounds = array<i64: 4, 1>}, {transform_indices = @transform_3, window_bounds = array<i64: 2, 256>}, {transform_indices = @transform_4, window_bounds = array<i64: 2, 4>}]} {
    %c0 = arith.constant 0 : index
    %c0_0 = arith.constant 0 : index
    %0 = vector.load %arg4[%c0, %c0_0] : memref<4x1xf32, #tpu.memory_space<vmem>>, vector<4x1xf32>
    %c0_1 = arith.constant 0 : index
    %c0_2 = arith.constant 0 : index
    %1 = vector.load %arg3[%c0_1, %c0_2] : memref<2x1xf32, #tpu.memory_space<vmem>>, vector<2x1xf32>
    %c0_3 = arith.constant 0 : index
    %c0_4 = arith.constant 0 : index
    %c0_5 = arith.constant 0 : index
    %2 = vector.load %arg2[%c0_3, %c0_4, %c0_5] : memref<2x4x256xf32, #tpu.memory_space<vmem>>, vector<2x4x256xf32>
    %3 = vector.shape_cast %0 : vector<4x1xf32> to vector<1x4x1xf32>
    %4 = vector.broadcast %3 : vector<1x4x1xf32> to vector<2x4x256xf32>
    %5 = arith.mulf %2, %4 : vector<2x4x256xf32>
    %cst = arith.constant dense<0.000000e+00> : vector<2x256xf32>
    %6 = vector.multi_reduction <add>, %5, %cst [1] : vector<2x4x256xf32> to vector<2x256xf32>
    %7 = vector.broadcast %1 : vector<2x1xf32> to vector<2x256xf32>
    %8 = arith.addf %6, %7 : vector<2x256xf32>
    %c0_6 = arith.constant 0 : index
    %c0_7 = arith.constant 0 : index
    %9 = vector.load %arg5[%c0_6, %c0_7] : memref<2x256xf32, #tpu.memory_space<vmem>>, vector<2x256xf32>
    tpu.vector_store %arg5[%c0_6, %c0_7], %8 {strides = array<i32>} : memref<2x256xf32, #tpu.memory_space<vmem>>, vector<2x256xf32>,
    %c0_i32 = arith.constant 0 : i32
    %10 = arith.cmpi eq, %arg1, %c0_i32 : i32
    %11 = arith.extui %10 : i1 to i32
    %c0_i32_8 = arith.constant 0 : i32
    %12 = arith.cmpi ne, %11, %c0_i32_8 : i32
    scf.if %12 {
      %cst_29 = arith.constant 0xFF800000 : f32
      %42 = vector.broadcast %cst_29 : f32 to vector<2x1xf32>
      %c0_30 = arith.constant 0 : index
      %c0_31 = arith.constant 0 : index
      %43 = vector.load %arg7[%c0_30, %c0_31] : memref<2x1xf32, #tpu.memory_space<vmem>>, vector<2x1xf32>
      tpu.vector_store %arg7[%c0_30, %c0_31], %42 {strides = array<i32>} : memref<2x1xf32, #tpu.memory_space<vmem>>, vector<2x1xf32>,
      %cst_32 = arith.constant 0.000000e+00 : f32
      %44 = vector.broadcast %cst_32 : f32 to vector<2x1xf32>
      %c0_33 = arith.constant 0 : index
      %c0_34 = arith.constant 0 : index
      %45 = vector.load %arg8[%c0_33, %c0_34] : memref<2x1xf32, #tpu.memory_space<vmem>>, vector<2x1xf32>
      tpu.vector_store %arg8[%c0_33, %c0_34], %44 {strides = array<i32>} : memref<2x1xf32, #tpu.memory_space<vmem>>, vector<2x1xf32>,
      %cst_35 = arith.constant 0.000000e+00 : f32
      %46 = vector.broadcast %cst_35 : f32 to vector<2x4xf32>
      %c0_36 = arith.constant 0 : index
      %c0_37 = arith.constant 0 : index
      %47 = vector.load %arg9[%c0_36, %c0_37] : memref<2x4xf32, #tpu.memory_space<vmem>>, vector<2x4xf32>
      tpu.vector_store %arg9[%c0_36, %c0_37], %46 {strides = array<i32>} : memref<2x4xf32, #tpu.memory_space<vmem>>, vector<2x4xf32>,
    } else {
    }
    %c0_9 = arith.constant 0 : index
    %c0_10 = arith.constant 0 : index
    %13 = vector.load %arg7[%c0_9, %c0_10] : memref<2x1xf32, #tpu.memory_space<vmem>>, vector<2x1xf32>
    %cst_11 = arith.constant dense<0xFF800000> : vector<2xf32>
    %14 = vector.multi_reduction <maximumf>, %8, %cst_11 [1] : vector<2x256xf32> to vector<2xf32>
    %15 = vector.shape_cast %14 : vector<2xf32> to vector<2x1xf32>
    %16 = arith.maximumf %13, %15 : vector<2x1xf32>
    %17 = arith.subf %13, %16 : vector<2x1xf32>
    %18 = math.exp %17 : vector<2x1xf32>
    %19 = vector.broadcast %16 : vector<2x1xf32> to vector<2x256xf32>
    %20 = arith.subf %8, %19 : vector<2x256xf32>
    %21 = math.exp %20 : vector<2x256xf32>
    %c0_12 = arith.constant 0 : index
    %c0_13 = arith.constant 0 : index
    %22 = vector.load %arg8[%c0_12, %c0_13] : memref<2x1xf32, #tpu.memory_space<vmem>>, vector<2x1xf32>
    %23 = arith.mulf %18, %22 : vector<2x1xf32>
    %cst_14 = arith.constant dense<0.000000e+00> : vector<2xf32>
    %24 = vector.multi_reduction <add>, %21, %cst_14 [1] : vector<2x256xf32> to vector<2xf32>
    %25 = vector.shape_cast %24 : vector<2xf32> to vector<2x1xf32>
    %26 = arith.addf %23, %25 : vector<2x1xf32>
    %c0_15 = arith.constant 0 : index
    %c0_16 = arith.constant 0 : index
    %27 = vector.load %arg8[%c0_15, %c0_16] : memref<2x1xf32, #tpu.memory_space<vmem>>, vector<2x1xf32>
    tpu.vector_store %arg8[%c0_15, %c0_16], %26 {strides = array<i32>} : memref<2x1xf32, #tpu.memory_space<vmem>>, vector<2x1xf32>,
    %c0_17 = arith.constant 0 : index
    %c0_18 = arith.constant 0 : index
    %28 = vector.load %arg9[%c0_17, %c0_18] : memref<2x4xf32, #tpu.memory_space<vmem>>, vector<2x4xf32>
    %29 = vector.broadcast %18 : vector<2x1xf32> to vector<2x4xf32>
    %30 = arith.mulf %29, %28 : vector<2x4xf32>
    %31 = vector.shape_cast %21 : vector<2x256xf32> to vector<2x1x256xf32>
    %c0_19 = arith.constant 0 : index
    %c0_20 = arith.constant 0 : index
    %c0_21 = arith.constant 0 : index
    %32 = vector.load %arg2[%c0_19, %c0_20, %c0_21] : memref<2x4x256xf32, #tpu.memory_space<vmem>>, vector<2x4x256xf32>
    %33 = vector.broadcast %31 : vector<2x1x256xf32> to vector<2x4x256xf32>
    %34 = arith.mulf %33, %32 : vector<2x4x256xf32>
    %cst_22 = arith.constant dense<0.000000e+00> : vector<2x4xf32>
    %35 = vector.multi_reduction <add>, %34, %cst_22 [2] : vector<2x4x256xf32> to vector<2x4xf32>
    %36 = arith.addf %30, %35 : vector<2x4xf32>
    %c0_23 = arith.constant 0 : index
    %c0_24 = arith.constant 0 : index
    %37 = vector.load %arg9[%c0_23, %c0_24] : memref<2x4xf32, #tpu.memory_space<vmem>>, vector<2x4xf32>
    tpu.vector_store %arg9[%c0_23, %c0_24], %36 {strides = array<i32>} : memref<2x4xf32, #tpu.memory_space<vmem>>, vector<2x4xf32>,
    %c0_25 = arith.constant 0 : index
    %c0_26 = arith.constant 0 : index
    %38 = vector.load %arg7[%c0_25, %c0_26] : memref<2x1xf32, #tpu.memory_space<vmem>>, vector<2x1xf32>
    tpu.vector_store %arg7[%c0_25, %c0_26], %16 {strides = array<i32>} : memref<2x1xf32, #tpu.memory_space<vmem>>, vector<2x1xf32>,
    %c0_i32_27 = arith.constant 0 : i32
    %39 = arith.cmpi eq, %arg1, %c0_i32_27 : i32
    %40 = arith.extui %39 : i1 to i32
    %c0_i32_28 = arith.constant 0 : i32
    %41 = arith.cmpi ne, %40, %c0_i32_28 : i32
    scf.if %41 {
      %c0_29 = arith.constant 0 : index
      %c0_30 = arith.constant 0 : index
      %42 = vector.load %arg9[%c0_29, %c0_30] : memref<2x4xf32, #tpu.memory_space<vmem>>, vector<2x4xf32>
      %c0_31 = arith.constant 0 : index
      %c0_32 = arith.constant 0 : index
      %43 = vector.load %arg8[%c0_31, %c0_32] : memref<2x1xf32, #tpu.memory_space<vmem>>, vector<2x1xf32>
      %44 = vector.broadcast %43 : vector<2x1xf32> to vector<2x4xf32>
      %45 = arith.divf %42, %44 : vector<2x4xf32>
      %c0_33 = arith.constant 0 : index
      %c0_34 = arith.constant 0 : index
      %46 = vector.load %arg6[%c0_33, %c0_34] : memref<2x4xf32, #tpu.memory_space<vmem>>, vector<2x4xf32>
      tpu.vector_store %arg6[%c0_33, %c0_34], %45 {strides = array<i32>} : memref<2x4xf32, #tpu.memory_space<vmem>>, vector<2x4xf32>,
    } else {
    }
    return
  }
  func.func @transform_0(%arg0: i32, %arg1: i32) -> (i32, i32, i32) {
    %c0_i32 = arith.constant 0 : i32
    %c0_i32_0 = arith.constant 0 : i32
    return %arg0, %c0_i32, %arg1 : i32, i32, i32
  }
  func.func @transform_1(%arg0: i32, %arg1: i32) -> (i32, i32) {
    %c0_i32 = arith.constant 0 : i32
    %c0_i32_0 = arith.constant 0 : i32
    return %arg0, %c0_i32 : i32, i32
  }
  func.func @transform_2(%arg0: i32, %arg1: i32) -> (i32, i32) {
    %c0_i32 = arith.constant 0 : i32
    %c0_i32_0 = arith.constant 0 : i32
    %c0_i32_1 = arith.constant 0 : i32
    return %c0_i32, %c0_i32_0 : i32, i32
  }
  func.func @transform_3(%arg0: i32, %arg1: i32) -> (i32, i32) {
    %c0_i32 = arith.constant 0 : i32
    return %arg0, %arg1 : i32, i32
  }
  func.func @transform_4(%arg0: i32, %arg1: i32) -> (i32, i32) {
    %c0_i32 = arith.constant 0 : i32
    %c0_i32_0 = arith.constant 0 : i32
    return %arg0, %c0_i32 : i32, i32
  }
}

</mosaic_0001>

<llo_original>
// kernel: tpu_custom_call.1
$region0: #{tpu_custom_call.1}
  #allocation0 [shape = 'u32[]', space=smem, size = 0x4, offset = 0x4, fixed_abs, tag = 'smem constant byte address 0x4 - core index']
  #allocation1 [shape = 'u32[72,128]{1,0:T(1,128)}', space=vmem, size = 0x9000, scoped, tag = 'internal scratch']
  #allocation2 [shape = 'f32[2,1]{1,0:T(2,128)}', space=vmem, size = 0x400, scoped, tag = 'scratch operand']
  #allocation3 [shape = 'f32[2,1]{1,0:T(2,128)}', space=vmem, size = 0x400, scoped, tag = 'scratch operand']
  #allocation4 [shape = 'f32[2,4]{1,0:T(2,128)}', space=vmem, size = 0x400, scoped, tag = 'scratch operand']
  %s0 = inlined_call_operand.hbm [shape: f32[2,4,256], index: 0, kind: input, shape index: {}]
  %s1 = inlined_call_operand.vmem [shape: f32[2,1], index: 1, kind: input, shape index: {}]
  %s2 = inlined_call_operand.vmem [shape: f32[4,1], index: 2, kind: input, shape index: {}]
  %s3 = inlined_call_operand.hbm [shape: f32[2,256], index: 3, kind: output, shape index: {0}]
  %s4 = inlined_call_operand.hbm [shape: f32[2,4], index: 4, kind: output, shape index: {1}]
  %5 = xla_tuple %s3, %s4
  %s6 = sld [smem:[#allocation0]]
  $region42: #{tpu_custom_call.1} parent=0
    _
  %s8 = ssub.s32 1, %s6
  %s9 = scalar_select 0, %s8, %s6
  $region1: #{tpu_custom_call.1} parent=0
    #allocation5 [shape = 'u8[8192]{0}', space=vmem, size = 0x2000, scoped, tag = 'input window, operand 0, single buffered']
    #allocation6 [shape = 's32[1]{0}', space=sflag, size = 0x4, scoped, tag = 'scoped memory for tpu_custom_call.1']
    #allocation7 [shape = 's32[1]{0}', space=sflag, size = 0x4, scoped, tag = 'scoped memory for tpu_custom_call.1']
    #allocation8 [shape = 'u8[2048]{0}', space=vmem, size = 0x800, scoped, tag = 'output window, operand 0, single buffered']
    #allocation9 [shape = 'u8[1024]{0}', space=vmem, size = 0x400, scoped, tag = 'output window, operand 1, single buffered']
    #allocation10 [shape = 's32[1]{0}', space=sflag, size = 0x4, scoped, tag = 'scoped memory for tpu_custom_call.1']
    %10 = vsyncpa [#allocation6], 0
    %11 = vsyncpa [#allocation7], 0
    %12 = vsyncpa [#allocation10], 0
    // Predicated region
    $region2: #{tpu_custom_call.1} parent=1 // pred_check
      _
    $region3: #{tpu_custom_call.1} parent=1 // pred_check_branch
      %14 = sbr.rel (0) target = $region5
    $region4: #{tpu_custom_call.1} parent=1 // pred_region
      %16 = vsyncadd [#allocation6], 0
      %s17 = sshll.u32 %s0, 4
      %s18 = int_to_ptr.hbm [resolvable:$true] %s17
      %s19 = sshll.u32 [#allocation5], 4
      %s20 = int_to_ptr.vmem [resolvable:$true] %s19
      %25 = dma.hbm_to_vmem [thread:$0]  %s18, 256, %s20, [#allocation6], 128, 128, 8
    $region5: #{tpu_custom_call.1} parent=1 // pred_fallthru
      _
    // Predicated region
    $region6: #{tpu_custom_call.1} parent=1 // pred_check
      _
    $region7: #{tpu_custom_call.1} parent=1 // pred_check_branch
      %27 = sbr.rel (0) target = $region9
    $region8: #{tpu_custom_call.1} parent=1 // pred_region
      _
    $region9: #{tpu_custom_call.1} parent=1 // pred_fallthru
      _
    // Predicated region
    $region10: #{tpu_custom_call.1} parent=1 // pred_check
      _
    $region11: #{tpu_custom_call.1} parent=1 // pred_check_branch
      %29 = sbr.rel (0) target = $region13
    $region12: #{tpu_custom_call.1} parent=1 // pred_region
      _
    $region13: #{tpu_custom_call.1} parent=1 // pred_fallthru
      _
    // Predicated region
    $region14: #{tpu_custom_call.1} parent=1 // pred_check
      _
    $region15: #{tpu_custom_call.1} parent=1 // pred_check_branch
      %31 = sbr.rel (0) target = $region17
    $region16: #{tpu_custom_call.1} parent=1 // pred_region
      %33 = dma.done [#allocation6], 256
    $region17: #{tpu_custom_call.1} parent=1 // pred_fallthru
      _
    %v34 = vld [vmem:[%s2] sm:$0xf]
    %v35 = vld [vmem:[%s1] sm:$0x3]
    %v36 = vld [vmem:[#allocation5] sm:$0xff]
    %v37 = vld [vmem:[#allocation5 + $0x8] sm:$0xff]
    %39 = vset.pattern.permute.xlu0 0
    %40 = vperm.xlu0 %39, %v34
    %v41 = vpop.permute.xlu0 %40
    %v43 = vunpack.c.l.s4 839922192
    %v44 = vunpack.c.0.s8 %v43
    %v45 = vperm.slane %v41, %v44
    %v47 = vmul.f32 %v36, %v45
    %v48 = vmul.f32 %v37, %v45
    %51 = vst [vmem:[#allocation1] ss:$2 sm:$0xff] %v47
    %v52 = vld.sshfl [vmem:[#allocation1] sm:$0xff pattern:$0x75316420]
    %v53 = vld.sshfl [vmem:[#allocation1 + $0x8] sm:$0xff pattern:$0x75316420]
    %s54 = scalar_lea.vmem [#allocation1], 16
    %55 = vst [vmem:[%s54] ss:$2 sm:$0xff] %v48
    %v56 = vld.sshfl [vmem:[#allocation1 + $0x10] sm:$0xff pattern:$0x75316420]
    %v57 = vld.sshfl [vmem:[#allocation1 + $0x18] sm:$0xff pattern:$0x75316420]
    %vm62 = vcmask 1043456
    %v63 = vsel %vm62, %v52, 0.0
    %v64 = vrot.slane %v63, 4
    %v65 = vadd.f32 %v63, %v64
    %v66 = vrot.slane %v65, 2
    %v67 = vadd.f32 %v65, %v66
    %v68 = vrot.slane %v67, 1
    %v69 = vadd.f32 %v67, %v68
    %v70 = vsel %vm62, %v53, 0.0
    %v71 = vrot.slane %v70, 4
    %v72 = vadd.f32 %v70, %v71
    %v73 = vrot.slane %v72, 2
    %v74 = vadd.f32 %v72, %v73
    %v75 = vrot.slane %v74, 1
    %v76 = vadd.f32 %v74, %v75
    %v77 = vsel %vm62, %v56, 0.0
    %v78 = vrot.slane %v77, 4
    %v79 = vadd.f32 %v77, %v78
    %v80 = vrot.slane %v79, 2
    %v81 = vadd.f32 %v79, %v80
    %v82 = vrot.slane %v81, 1
    %v83 = vadd.f32 %v81, %v82
    %v84 = vsel %vm62, %v57, 0.0
    %v85 = vrot.slane %v84, 4
    %v86 = vadd.f32 %v84, %v85
    %v87 = vrot.slane %v86, 2
    %v88 = vadd.f32 %v86, %v87
    %v89 = vrot.slane %v88, 1
    %v90 = vadd.f32 %v88, %v89
    %92 = vset.pattern.permute.xlu0 0
    %93 = vperm.xlu0 %92, %v35
    %v94 = vpop.permute.xlu0 %93
    %v95 = vrot.slane %v94, 1
    %v98 = vadd.f32 %v69, %v94
    %v99 = vadd.f32 %v76, %v94
    %v100 = vadd.f32 %v83, %v95
    %v101 = vadd.f32 %v90, %v95
    %v106 = vrot.slane %v99, 6
    %v107 = vrot.slane %v101, 6
    %vm108 = vcmask 1041408
    %v109 = vsel %vm108, %v98, %v106
    %v110 = vsel %vm108, %v100, %v107
    %vm111 = vcmask 1044484
    %v112 = vsel %vm111, %v109, %v109
    %vm113 = vcmask 1046534
    %v114 = vsel %vm113, %v109, %v112
    %v115 = vrot.slane %v110, 7
    %vm116 = vcmask 1041409
    %v117 = vsel %vm116, %v115, %v114
    %vm118 = vcmask 1043459
    %v119 = vsel %vm118, %v115, %v117
    %vm120 = vcmask 1045509
    %v121 = vsel %vm120, %v115, %v119
    %vm122 = vcmask 1047559
    %v123 = vsel %vm122, %v115, %v121
    %125 = vst [vmem:[#allocation8] sm:$0xf] %v123
    %p126 = scmp.eq.s32.totalorder 0, 0
    // Predicated region
    $region18: #{tpu_custom_call.1} parent=1 // pred_check
      %p127 = pneg %p126
    $region19: #{tpu_custom_call.1} parent=1 // pred_check_branch
      %129 = sbr.rel (%p127) target = $region21
    $region20: #{tpu_custom_call.1} parent=1 // pred_region
      %vm130 = vcmask 1024
      %131 = vst.msk [vmem:[#allocation2] sm:$0x3] %vm130, -inf
      %132 = vst.msk [vmem:[#allocation3] sm:$0x3] %vm130, 0.0
      %vm133 = vcmask 25600
      %134 = vst.msk [vmem:[#allocation4] sm:$0x3] %vm133, 0.0
    $region21: #{tpu_custom_call.1} parent=1 // pred_fallthru
      _
    %v135 = vld [vmem:[#allocation2] sm:$0x3]
    %v136 = vrot.slane %v100, 7
    %v137 = vsel %vm116, %v136, %v98
    %v138 = vrot.slane %v101, 7
    %v139 = vsel %vm116, %v138, %v99
    %v142 = vsel %vm108, %v137, -inf
    %v143 = vsel %vm108, %v139, -inf
    %v144 = vmax.f32 %v142, %v143
    %145 = vmax.xlane.f32.xlu0 %v144
    %v146 = vpop.xlane.xlu0 %145
    %v147 = vmax.f32 %v135, %v146
    %v148 = vsub.f32 %v135, %v147
    %v149 = vmul.f32 %v148, 1.442695
    %v150 = vpow.pop %v149
    %152 = vset.pattern.permute.xlu0 0
    %153 = vperm.xlu0 %152, %v147
    %v154 = vpop.permute.xlu0 %153
    %v155 = vrot.slane %v154, 1
    %v158 = vsub.f32 %v98, %v154
    %v159 = vsub.f32 %v99, %v154
    %v160 = vsub.f32 %v100, %v155
    %v161 = vsub.f32 %v101, %v155
    %v162 = vmul.f32 %v158, 1.442695
    %v163 = vpow.pop %v162
    %v164 = vmul.f32 %v159, 1.442695
    %v165 = vpow.pop %v164
    %v166 = vmul.f32 %v160, 1.442695
    %v167 = vpow.pop %v166
    %v168 = vmul.f32 %v161, 1.442695
    %v169 = vpow.pop %v168
    %v170 = vld [vmem:[#allocation3] sm:$0x3]
    %v171 = vmul.f32 %v150, %v170
    %v176 = vrot.slane %v167, 7
    %v177 = vsel %vm116, %v176, %v163
    %v178 = vrot.slane %v169, 7
    %v179 = vsel %vm116, %v178, %v165
    %v182 = vsel %vm108, %v177, 0.0
    %v183 = vsel %vm108, %v179, 0.0
    %v184 = vadd.f32 %v182, %v183
    %185 = vadd.xlane.f32.xlu0 %v184
    %v186 = vpop.xlane.xlu0 %185
    %v187 = vadd.f32 %v171, %v186
    %vm188 = vcmask 1024
    %189 = vst.msk [vmem:[#allocation3] sm:$0x3] %vm188, %v187
    %v190 = vld [vmem:[#allocation4] sm:$0x3]
    %192 = vset.pattern.permute.xlu0 0
    %193 = vperm.xlu0 %192, %v150
    %v194 = vpop.permute.xlu0 %193
    %v196 = vmul.f32 %v194, %v190
    %v197 = vld [vmem:[#allocation5] sm:$0xff]
    %v198 = vld [vmem:[#allocation5 + $0x8] sm:$0xff]
    %v199 = vperm.slane %v163, 0
    %v200 = vperm.slane %v165, 0
    %v201 = vperm.slane %v167, 0
    %v202 = vperm.slane %v169, 0
    %205 = vst [vmem:[#allocation1] ss:$2 sm:$0xff] %v197
    %v206 = vld.sshfl [vmem:[#allocation1] sm:$0xff pattern:$0x75316420]
    %v207 = vld.sshfl [vmem:[#allocation1 + $0x8] sm:$0xff pattern:$0x75316420]
    %s208 = scalar_lea.vmem [#allocation1], 16
    %209 = vst [vmem:[%s208] ss:$2 sm:$0xff] %v198
    %v210 = vld.sshfl [vmem:[#allocation1 + $0x10] sm:$0xff pattern:$0x75316420]
    %v211 = vld.sshfl [vmem:[#allocation1 + $0x18] sm:$0xff pattern:$0x75316420]
    %v216 = vmul.f32 %v199, %v206
    %v217 = vmul.f32 %v200, %v207
    %v218 = vmul.f32 %v201, %v210
    %v219 = vmul.f32 %v202, %v211
    %v220 = vsel %vm62, %v216, 0.0
    %v221 = vsel %vm62, %v217, 0.0
    %v222 = vadd.f32 %v220, %v221
    %223 = vadd.xlane.f32.xlu0 %v222
    %v224 = vpop.xlane.xlu0 %223
    %v225 = vsel %vm62, %v218, 0.0
    %v226 = vsel %vm62, %v219, 0.0
    %v227 = vadd.f32 %v225, %v226
    %228 = vadd.xlane.f32.xlu0 %v227
    %v229 = vpop.xlane.xlu0 %228
    %v232 = vlaneseq
    %v233 = vand.u32 %v232, 127
    %v234 = vperm.slane %v224, %v233
    %v235 = vperm.slane %v229, %v233
    %v236 = vsel %vm116, %v235, %v234
    %v238 = vadd.f32 %v196, %v236
    %vm239 = vcmask 25600
    %240 = vst.msk [vmem:[#allocation4] sm:$0x3] %vm239, %v238
    %241 = vst.msk [vmem:[#allocation2] sm:$0x3] %vm188, %v147
    // Predicated region
    $region22: #{tpu_custom_call.1} parent=1 // pred_check
      %p242 = pneg %p126
    $region23: #{tpu_custom_call.1} parent=1 // pred_check_branch
      %244 = sbr.rel (%p242) target = $region25
    $region24: #{tpu_custom_call.1} parent=1 // pred_region
      %v245 = vld [vmem:[#allocation4] sm:$0x3]
      %v246 = vld [vmem:[#allocation3] sm:$0x3]
      %248 = vset.pattern.permute.xlu0 0
      %249 = vperm.xlu0 %248, %v246
      %v250 = vpop.permute.xlu0 %249
      %v252 = vrcp.pop %v250
      %v253 = vmul.f32 %v250, %v252
      %v254 = vsub.f32 1.0, %v253
      %v255 = vmul.f32 %v252, %v254
      %v256 = vadd.f32 %v252, %v255
      %vm257 = vweird.f32 %v250
      %vm258 = vweird.f32 %v252
      %vm259 = vmor %vm257, %vm258
      %v260 = vsel %vm259, %v252, %v256
      %v261 = vand.u32 2147483647, %v250
      %vm262 = vcmp.eq.f32.partialorder %v261, 8.507059e+37
      %v263 = vand.u32 %v250, 2147483648
      %v264 = vor.u32 1.1754944e-38, %v263
      %v265 = vsel %vm262, %v264, %v260
      %v266 = vmul.f32 %v245, %v265
      %267 = vst.msk [vmem:[#allocation9] sm:$0x3] %vm239, %v266
    $region25: #{tpu_custom_call.1} parent=1 // pred_fallthru
      _
    // Predicated region
    $region26: #{tpu_custom_call.1} parent=1 // pred_check
      _
    $region27: #{tpu_custom_call.1} parent=1 // pred_check_branch
      %269 = sbr.rel (0) target = $region29
    $region28: #{tpu_custom_call.1} parent=1 // pred_region
      %271 = vsyncadd [#allocation7], 0
      %s273 = sshll.u32 [#allocation8], 4
      %s274 = int_to_ptr.vmem [resolvable:$true] %s273
      %s275 = sshll.u32 %s3, 4
      %s276 = int_to_ptr.hbm [resolvable:$true] %s275
      %278 = dma.vmem_to_hbm [thread:$0]  %s274, 64, %s276, [#allocation7]
    $region29: #{tpu_custom_call.1} parent=1 // pred_fallthru
      _
    // Predicated region
    $region30: #{tpu_custom_call.1} parent=1 // pred_check
      _
    $region31: #{tpu_custom_call.1} parent=1 // pred_check_branch
      %280 = sbr.rel (0) target = $region33
    $region32: #{tpu_custom_call.1} parent=1 // pred_region
      %282 = vsyncadd [#allocation10], 0
      %s284 = sshll.u32 [#allocation9], 4
      %s285 = int_to_ptr.vmem [resolvable:$true] %s284
      %s286 = sshll.u32 %s4, 4
      %s287 = int_to_ptr.hbm [resolvable:$true] %s286
      %289 = dma.vmem_to_hbm [thread:$0]  %s285, 32, %s287, [#allocation10]
    $region33: #{tpu_custom_call.1} parent=1 // pred_fallthru
      _
    // Predicated region
    $region34: #{tpu_custom_call.1} parent=1 // pred_check
      _
    $region35: #{tpu_custom_call.1} parent=1 // pred_check_branch
      %291 = sbr.rel (0) target = $region37
    $region36: #{tpu_custom_call.1} parent=1 // pred_region
      %293 = dma.done [#allocation7], 64
    $region37: #{tpu_custom_call.1} parent=1 // pred_fallthru
      _
    // Predicated region
    $region38: #{tpu_custom_call.1} parent=1 // pred_check
      _
    $region39: #{tpu_custom_call.1} parent=1 // pred_check_branch
      %295 = sbr.rel (0) target = $region41
    $region40: #{tpu_custom_call.1} parent=1 // pred_region
      %297 = dma.done [#allocation10], 32
    $region41: #{tpu_custom_call.1} parent=1 // pred_fallthru
      _
    %298 = vsyncpa [#allocation6], 1
    %299 = vsyncpa [#allocation7], 1
    %300 = vsyncpa [#allocation10], 1

</llo_original>
